<compile_context>
chip_gen: v7x
topology: tpu7x:2x2x1
jax: 0.10.0
libtpu: 0.0.40
codegen_flags: <defaults>
</compile_context>

<pallas_src>
import jax
import jax.numpy as jnp
from jax.experimental import pallas as pl
from jax.experimental.pallas import tpu as pltpu

_TM = 256      # A row-tile height (multiple of 256 for v6e/v7x MXU, of 128 for v5e)
_LANE = 128    # lane width: feature dims padded to this for unmasked vld/vst


def _round_up(v, m):
    return ((v + m - 1) // m) * m


def _pad2(m, rows, cols):
    r, c = m.shape
    return jnp.pad(m, ((0, rows - r), (0, cols - c)))


def gcn_aggregate_kernel(a_ref, z_ref, b_ref, o_ref):
    """One row tile of  out = A_hat @ Z + b   (Z = X @ W, precomputed).

    a_ref: (TM, Np)  bf16  -- streamed & double-buffered per grid step
    z_ref: (Np, Fop) bf16  -- constant index_map -> resident across the grid
    b_ref: (1, Fop)  f32
    o_ref: (TM, Fop)       -- bf16 for the intermediate h, f32 for the output
    """
    acc = jnp.dot(a_ref[...], z_ref[...], preferred_element_type=jnp.float32)
    o_ref[...] = (acc + b_ref[...]).astype(o_ref.dtype)


def _gcn_aggregate(a_p, z_p, b_p, out_dtype, tm):
    """Row-tiled, pipelined aggregation: (Np, Np) @ (Np, Fop) + (1, Fop)."""
    Np = a_p.shape[0]
    Fop = z_p.shape[1]
    assert Np % tm == 0
    grid = (Np // tm,)

    out_bytes = jnp.dtype(out_dtype).itemsize
    vmem_needed = (2 * tm * Np * 2        # A row tile, double-buffered, bf16
                   + 2 * Np * Fop * 2     # resident Z (2 buffers allocated), bf16
                   + 2 * 1 * Fop * 4      # bias, f32
                   + 2 * tm * Fop * out_bytes)
    # Raise the scoped-VMEM limit above the default 16/32 MiB when the padded
    # buffers need it; keep headroom and stay under v5e/v6e physical VMEM.
    vmem_limit = int(min(max(vmem_needed + (8 << 20), 32 << 20), 120 << 20))

    return pl.pallas_call(
        gcn_aggregate_kernel,
        out_shape=jax.ShapeDtypeStruct((Np, Fop), out_dtype),
        grid_spec=pltpu.PrefetchScalarGridSpec(
            num_scalar_prefetch=0,
            grid=grid,
            in_specs=[
                pl.BlockSpec((tm, Np), lambda i: (i, 0)),    # A row tile
                pl.BlockSpec((Np, Fop), lambda i: (0, 0)),   # Z, resident
                pl.BlockSpec((1, Fop), lambda i: (0, 0)),    # bias, resident
            ],
            out_specs=pl.BlockSpec((tm, Fop), lambda i: (i, 0)),
        ),
        compiler_params=pltpu.CompilerParams(
            dimension_semantics=("parallel",),               # v7x: 2 TCs share rows
            vmem_limit_bytes=vmem_limit),
        cost_estimate=pl.CostEstimate(
            flops=2 * Np * Np * Fop,
            transcendentals=0,
            bytes_accessed=(a_p.size * 2 + z_p.size * 2 + b_p.size * 4
                            + Np * Fop * out_bytes)),
    )(a_p, z_p, b_p)


def build_normalized_adjacency_padded(edge_index, num_nodes, num_nodes_padded):
    """A_hat = D^{-1/2}(A+I)D^{-1/2}, zero-padded to (Np, Np) and cast to bf16.

    Degree math stays f32; only the final padded MXU operand is bf16.
    # TODO(synk): PyG add_self_loops *adds* weights for duplicate edges /
    # existing self loops; this builder clamps to 1 (identical for simple
    # unweighted graphs, divergent if edge weights / multi-edges matter).
    """
    src, dst = edge_index[0], edge_index[1]
    adj = jnp.zeros((num_nodes, num_nodes), jnp.float32)
    adj = adj.at[src, dst].set(1.0)
    adj = adj.at[dst, src].set(1.0)                                   # undirected
    adj = jnp.maximum(adj, jnp.eye(num_nodes, dtype=jnp.float32))     # self loops
    deg = adj.sum(axis=1)
    d_inv_sqrt = jnp.where(deg > 0, 1.0 / jnp.sqrt(deg), 0.0)
    a_hat = d_inv_sqrt[:, None] * adj * d_inv_sqrt[None, :]
    a_p = jnp.zeros((num_nodes_padded, num_nodes_padded), jnp.bfloat16)
    return a_p.at[:num_nodes, :num_nodes].set(a_hat.astype(jnp.bfloat16))


def gcn_encoder_forward(x, edge_index, w1, b1, w2, b2):
    """Two stacked GCN layers.  Per layer: tiny X@W on the MXU via plain XLA
    (N*Fin*Fout flops) + the O(N^2) aggregation in the Pallas kernel."""
    N, F_in = x.shape
    F_out = w1.shape[1]

    Np = _round_up(N, _TM)            # rows padded to the row-tile size
    Fip = _round_up(F_in, _LANE)      # lane-dense feature dims
    Fop = _round_up(F_out, _LANE)

    # Padded bf16 A_hat built under this jit (no pre-kernel f32 NxN round trip).
    a_p = build_normalized_adjacency_padded(edge_index, N, Np)

    x_p = _pad2(x, Np, Fip).astype(jnp.bfloat16)
    w1_p = _pad2(w1, Fip, Fop).astype(jnp.bfloat16)
    w2_p = _pad2(w2, Fop, Fop).astype(jnp.bfloat16)
    b1_p = _pad2(b1.reshape(1, -1), 1, Fop).astype(jnp.float32)
    b2_p = _pad2(b2.reshape(1, -1), 1, Fop).astype(jnp.float32)

    # Layer 1 (intermediate h kept bf16).  Note: padded rows of h receive b1
    # (A's padded rows are zero); harmless because A's padded *columns* are
    # zero in layer 2 and padded output rows are sliced off below.
    z1 = jnp.dot(x_p, w1_p, preferred_element_type=jnp.float32).astype(jnp.bfloat16)
    h = _gcn_aggregate(a_p, z1, b1_p, jnp.bfloat16, _TM)

    # Layer 2 (final output in f32).
    z2 = jnp.dot(h, w2_p, preferred_element_type=jnp.float32).astype(jnp.bfloat16)
    out = _gcn_aggregate(a_p, z2, b2_p, jnp.float32, _TM)

    return out[:N, :F_out]


gcn_encoder = jax.jit(gcn_encoder_forward)


def init_params(key, in_channels, out_channels):
    """Glorot-style weights for conv1 (in->out) and conv2 (out->out).
    PyG zero-inits biases; small nonzero biases here exercise the bias path."""
    k1, k2, k3, k4 = jax.random.split(key, 4)
    s1 = (6.0 / (in_channels + out_channels)) ** 0.5
    s2 = (6.0 / (out_channels + out_channels)) ** 0.5
    w1 = jax.random.uniform(k1, (in_channels, out_channels), jnp.float32, -s1, s1)
    w2 = jax.random.uniform(k2, (out_channels, out_channels), jnp.float32, -s2, s2)
    b1 = 0.01 * jax.random.normal(k3, (out_channels,), jnp.float32)
    b2 = 0.01 * jax.random.normal(k4, (out_channels,), jnp.float32)
    return (w1, b1), (w2, b2)


if __name__ == "__main__":
    key = jax.random.PRNGKey(0)
    k_x, k_e, k_p = jax.random.split(key, 3)

    num_nodes = 16
    in_channels = 32
    out_channels = 16
    num_edges = 40

    x = jax.random.normal(k_x, (num_nodes, in_channels), jnp.float32)
    edge_index = jax.random.randint(k_e, (2, num_edges), 0, num_nodes, jnp.int32)
    (w1, b1), (w2, b2) = init_params(k_p, in_channels, out_channels)

    out = gcn_encoder(x, edge_index, w1, b1, w2, b2)
    jax.block_until_ready(out)
    assert out.shape == (num_nodes, out_channels)

    # Pure-JAX reference mirroring the kernel's bf16-operand / f32-accumulate math.
    src, dst = edge_index[0], edge_index[1]
    adj = jnp.zeros((num_nodes, num_nodes), jnp.float32)
    adj = adj.at[src, dst].set(1.0)
    adj = adj.at[dst, src].set(1.0)
    adj = jnp.maximum(adj, jnp.eye(num_nodes, dtype=jnp.float32))
    deg = adj.sum(axis=1)
    dis = jnp.where(deg > 0, 1.0 / jnp.sqrt(deg), 0.0)
    a_bf = (dis[:, None] * adj * dis[None, :]).astype(jnp.bfloat16)

    z1 = jnp.dot(x.astype(jnp.bfloat16), w1.astype(jnp.bfloat16),
                 preferred_element_type=jnp.float32).astype(jnp.bfloat16)
    h_ref = (jnp.dot(a_bf, z1, preferred_element_type=jnp.float32)
             + b1[None, :]).astype(jnp.bfloat16)
    z2 = jnp.dot(h_ref, w2.astype(jnp.bfloat16),
                 preferred_element_type=jnp.float32).astype(jnp.bfloat16)
    ref = jnp.dot(a_bf, z2, preferred_element_type=jnp.float32) + b2[None, :]

    err = jnp.max(jnp.abs(out - ref))
    assert jnp.allclose(out, ref, atol=3e-2, rtol=3e-2), f"max abs err {err}"

    print("KERNEL_OK")
</pallas_src>

<mosaic_0001>
module attributes {stable_mosaic.version = 11 : i64} {
  func.func @gcn_aggregate_kernel(%arg0: i32, %arg1: memref<256x256xbf16, #tpu.memory_space<vmem>>, %arg2: memref<256x128xbf16, #tpu.memory_space<vmem>>, %arg3: memref<1x128xf32, #tpu.memory_space<vmem>>, %arg4: memref<256x128xbf16, #tpu.memory_space<vmem>>) attributes {dimension_semantics = [#tpu.dimension_semantics<parallel>], iteration_bounds = array<i64: 1>, scalar_prefetch = 0 : i64, scratch_operands = 0 : i64, tpu.core_type = #tpu.core_type<tc>, window_params = [{transform_indices = @transform_0, window_bounds = array<i64: 256, 256>}, {pipeline_mode = #tpu.pipeline_mode<synchronous>, transform_indices = @transform_1, window_bounds = array<i64: 256, 128>}, {pipeline_mode = #tpu.pipeline_mode<synchronous>, transform_indices = @transform_2, window_bounds = array<i64: 1, 128>}, {transform_indices = @transform_3, window_bounds = array<i64: 256, 128>}]} {
    %c0 = arith.constant 0 : index
    %c0_0 = arith.constant 0 : index
    %0 = vector.load %arg1[%c0, %c0_0] : memref<256x256xbf16, #tpu.memory_space<vmem>>, vector<256x256xbf16>
    %c0_1 = arith.constant 0 : index
    %c0_2 = arith.constant 0 : index
    %1 = vector.load %arg2[%c0_1, %c0_2] : memref<256x128xbf16, #tpu.memory_space<vmem>>, vector<256x128xbf16>
    %cst = arith.constant dense<0.000000e+00> : vector<256x128xf32>
    %2 = tpu.matmul %0, %1, %cst {dimension_numbers = #tpu.dot_dimension_numbers<[1], [0], [0], [1], [0, 0, 1, 1], [], []>} : vector<256x256xbf16>, vector<256x128xbf16>, vector<256x128xf32> -> vector<256x128xf32>
    %c0_3 = arith.constant 0 : index
    %c0_4 = arith.constant 0 : index
    %3 = vector.load %arg3[%c0_3, %c0_4] : memref<1x128xf32, #tpu.memory_space<vmem>>, vector<1x128xf32>
    %4 = vector.broadcast %3 : vector<1x128xf32> to vector<256x128xf32>
    %5 = arith.addf %2, %4 : vector<256x128xf32>
    %6 = arith.truncf %5 : vector<256x128xf32> to vector<256x128xbf16>
    %c0_5 = arith.constant 0 : index
    %c0_6 = arith.constant 0 : index
    %7 = vector.load %arg4[%c0_5, %c0_6] : memref<256x128xbf16, #tpu.memory_space<vmem>>, vector<256x128xbf16>
    tpu.vector_store %arg4[%c0_5, %c0_6], %6 {strides = array<i32>} : memref<256x128xbf16, #tpu.memory_space<vmem>>, vector<256x128xbf16>,
    return
  }
  func.func @transform_0(%arg0: i32) -> (i32, i32) {
    %c0_i32 = arith.constant 0 : i32
    %c0_i32_0 = arith.constant 0 : i32
    return %arg0, %c0_i32 : i32, i32
  }
  func.func @transform_1(%arg0: i32) -> (i32, i32) {
    %c0_i32 = arith.constant 0 : i32
    %c0_i32_0 = arith.constant 0 : i32
    %c0_i32_1 = arith.constant 0 : i32
    return %c0_i32, %c0_i32_0 : i32, i32
  }
  func.func @transform_2(%arg0: i32) -> (i32, i32) {
    %c0_i32 = arith.constant 0 : i32
    %c0_i32_0 = arith.constant 0 : i32
    %c0_i32_1 = arith.constant 0 : i32
    return %c0_i32, %c0_i32_0 : i32, i32
  }
  func.func @transform_3(%arg0: i32) -> (i32, i32) {
    %c0_i32 = arith.constant 0 : i32
    %c0_i32_0 = arith.constant 0 : i32
    return %arg0, %c0_i32 : i32, i32
  }
}

module attributes {stable_mosaic.version = 11 : i64} {
  func.func @gcn_aggregate_kernel(%arg0: i32, %arg1: memref<256x256xbf16, #tpu.memory_space<vmem>>, %arg2: memref<256x128xbf16, #tpu.memory_space<vmem>>, %arg3: memref<1x128xf32, #tpu.memory_space<vmem>>, %arg4: memref<256x128xf32, #tpu.memory_space<vmem>>) attributes {dimension_semantics = [#tpu.dimension_semantics<parallel>], iteration_bounds = array<i64: 1>, scalar_prefetch = 0 : i64, scratch_operands = 0 : i64, tpu.core_type = #tpu.core_type<tc>, window_params = [{transform_indices = @transform_0, window_bounds = array<i64: 256, 256>}, {pipeline_mode = #tpu.pipeline_mode<synchronous>, transform_indices = @transform_1, window_bounds = array<i64: 256, 128>}, {pipeline_mode = #tpu.pipeline_mode<synchronous>, transform_indices = @transform_2, window_bounds = array<i64: 1, 128>}, {transform_indices = @transform_3, window_bounds = array<i64: 256, 128>}]} {
    %c0 = arith.constant 0 : index
    %c0_0 = arith.constant 0 : index
    %0 = vector.load %arg1[%c0, %c0_0] : memref<256x256xbf16, #tpu.memory_space<vmem>>, vector<256x256xbf16>
    %c0_1 = arith.constant 0 : index
    %c0_2 = arith.constant 0 : index
    %1 = vector.load %arg2[%c0_1, %c0_2] : memref<256x128xbf16, #tpu.memory_space<vmem>>, vector<256x128xbf16>
    %cst = arith.constant dense<0.000000e+00> : vector<256x128xf32>
    %2 = tpu.matmul %0, %1, %cst {dimension_numbers = #tpu.dot_dimension_numbers<[1], [0], [0], [1], [0, 0, 1, 1], [], []>} : vector<256x256xbf16>, vector<256x128xbf16>, vector<256x128xf32> -> vector<256x128xf32>
    %c0_3 = arith.constant 0 : index
    %c0_4 = arith.constant 0 : index
    %3 = vector.load %arg3[%c0_3, %c0_4] : memref<1x128xf32, #tpu.memory_space<vmem>>, vector<1x128xf32>
    %4 = vector.broadcast %3 : vector<1x128xf32> to vector<256x128xf32>
    %5 = arith.addf %2, %4 : vector<256x128xf32>
    %c0_5 = arith.constant 0 : index
    %c0_6 = arith.constant 0 : index
    %6 = vector.load %arg4[%c0_5, %c0_6] : memref<256x128xf32, #tpu.memory_space<vmem>>, vector<256x128xf32>
    tpu.vector_store %arg4[%c0_5, %c0_6], %5 {strides = array<i32>} : memref<256x128xf32, #tpu.memory_space<vmem>>, vector<256x128xf32>,
    return
  }
  func.func @transform_0(%arg0: i32) -> (i32, i32) {
    %c0_i32 = arith.constant 0 : i32
    %c0_i32_0 = arith.constant 0 : i32
    return %arg0, %c0_i32 : i32, i32
  }
  func.func @transform_1(%arg0: i32) -> (i32, i32) {
    %c0_i32 = arith.constant 0 : i32
    %c0_i32_0 = arith.constant 0 : i32
    %c0_i32_1 = arith.constant 0 : i32
    return %c0_i32, %c0_i32_0 : i32, i32
  }
  func.func @transform_2(%arg0: i32) -> (i32, i32) {
    %c0_i32 = arith.constant 0 : i32
    %c0_i32_0 = arith.constant 0 : i32
    %c0_i32_1 = arith.constant 0 : i32
    return %c0_i32, %c0_i32_0 : i32, i32
  }
  func.func @transform_3(%arg0: i32) -> (i32, i32) {
    %c0_i32 = arith.constant 0 : i32
    %c0_i32_0 = arith.constant 0 : i32
    return %arg0, %c0_i32 : i32, i32
  }
}

</mosaic_0001>

<llo_original>
// kernel: gcn_encoder_forward.3
$region0: #{gcn_encoder_forward.3}
  #allocation0 [shape = 'u32[]', space=smem, size = 0x4, offset = 0x4, fixed_abs, tag = 'smem constant byte address 0x4 - core index']
  #allocation1 [shape = 'u32[144,128]{1,0:T(1,128)}', space=vmem, size = 0x12000, scoped, tag = 'internal scratch']
  %s0 = inlined_call_operand.vmem [shape: bf16[256,256], index: 0, kind: input, shape index: {}]
  %s1 = inlined_call_operand.vmem [shape: bf16[256,128], index: 1, kind: input, shape index: {}]
  %s2 = inlined_call_operand.vmem [shape: f32[1,128], index: 2, kind: input, shape index: {}]
  %s3 = inlined_call_operand.vmem [shape: f32[256,128], index: 3, kind: output, shape index: {}]
  %s4 = sld [smem:[#allocation0]]
  $region22: #{gcn_encoder_forward.3} parent=0
    _
  %s6 = ssub.s32 1, %s4
  %s7 = scalar_select 0, %s6, %s4
  // Predicated region
  $region2: #{gcn_encoder_forward.3} parent=0 // pred_check
    _
  $region3: #{gcn_encoder_forward.3} parent=0 // pred_check_branch
    %9 = sbr.rel (0) target = $region5
  $region4: #{gcn_encoder_forward.3} parent=0 // pred_region
    _
  $region5: #{gcn_encoder_forward.3} parent=0 // pred_fallthru
    _
  // Predicated region
  $region6: #{gcn_encoder_forward.3} parent=0 // pred_check
    _
  $region7: #{gcn_encoder_forward.3} parent=0 // pred_check_branch
    %11 = sbr.rel (0) target = $region9
  $region8: #{gcn_encoder_forward.3} parent=0 // pred_region
    _
  $region9: #{gcn_encoder_forward.3} parent=0 // pred_fallthru
    _
  // Predicated region
  $region10: #{gcn_encoder_forward.3} parent=0 // pred_check
    _
  $region11: #{gcn_encoder_forward.3} parent=0 // pred_check_branch
    %13 = sbr.rel (0) target = $region13
  $region12: #{gcn_encoder_forward.3} parent=0 // pred_region
    _
  $region13: #{gcn_encoder_forward.3} parent=0 // pred_fallthru
    _
  %v15 = vld [vmem:[%s0] sm:$0xff]
  %v16 = vld [vmem:[%s0 + $0x8] sm:$0xff]
  %v17 = vld [vmem:[%s0 + $0x10] sm:$0xff]
  %v18 = vld [vmem:[%s0 + $0x18] sm:$0xff]
  %v19 = vld [vmem:[%s0 + $0x20] sm:$0xff]
  %v20 = vld [vmem:[%s0 + $0x28] sm:$0xff]
  %v21 = vld [vmem:[%s0 + $0x30] sm:$0xff]
  %v22 = vld [vmem:[%s0 + $0x38] sm:$0xff]
  %v23 = vld [vmem:[%s0 + $0x40] sm:$0xff]
  %v24 = vld [vmem:[%s0 + $0x48] sm:$0xff]
  %v25 = vld [vmem:[%s0 + $0x50] sm:$0xff]
  %v26 = vld [vmem:[%s0 + $0x58] sm:$0xff]
  %v27 = vld [vmem:[%s0 + $0x60] sm:$0xff]
  %v28 = vld [vmem:[%s0 + $0x68] sm:$0xff]
  %v29 = vld [vmem:[%s0 + $0x70] sm:$0xff]
  %v30 = vld [vmem:[%s0 + $0x78] sm:$0xff]
  %v31 = vld [vmem:[%s0 + $0x80] sm:$0xff]
  %v32 = vld [vmem:[%s0 + $0x88] sm:$0xff]
  %v33 = vld [vmem:[%s0 + $0x90] sm:$0xff]
  %v34 = vld [vmem:[%s0 + $0x98] sm:$0xff]
  %v35 = vld [vmem:[%s0 + $0xa0] sm:$0xff]
  %v36 = vld [vmem:[%s0 + $0xa8] sm:$0xff]
  %v37 = vld [vmem:[%s0 + $0xb0] sm:$0xff]
  %v38 = vld [vmem:[%s0 + $0xb8] sm:$0xff]
  %v39 = vld [vmem:[%s0 + $0xc0] sm:$0xff]
  %v40 = vld [vmem:[%s0 + $0xc8] sm:$0xff]
  %v41 = vld [vmem:[%s0 + $0xd0] sm:$0xff]
  %v42 = vld [vmem:[%s0 + $0xd8] sm:$0xff]
  %v43 = vld [vmem:[%s0 + $0xe0] sm:$0xff]
  %v44 = vld [vmem:[%s0 + $0xe8] sm:$0xff]
  %v45 = vld [vmem:[%s0 + $0xf0] sm:$0xff]
  %v46 = vld [vmem:[%s0 + $0xf8] sm:$0xff]
  %v47 = vld [vmem:[%s1] sm:$0xf]
  %v48 = vld [vmem:[%s1 + $0x4] sm:$0xf]
  %v49 = vld [vmem:[%s1 + $0x8] sm:$0xf]
  %v50 = vld [vmem:[%s1 + $0xc] sm:$0xf]
  %v51 = vld [vmem:[%s1 + $0x10] sm:$0xf]
  %v52 = vld [vmem:[%s1 + $0x14] sm:$0xf]
  %v53 = vld [vmem:[%s1 + $0x18] sm:$0xf]
  %v54 = vld [vmem:[%s1 + $0x1c] sm:$0xf]
  %v55 = vld [vmem:[%s1 + $0x20] sm:$0xf]
  %v56 = vld [vmem:[%s1 + $0x24] sm:$0xf]
  %v57 = vld [vmem:[%s1 + $0x28] sm:$0xf]
  %v58 = vld [vmem:[%s1 + $0x2c] sm:$0xf]
  %v59 = vld [vmem:[%s1 + $0x30] sm:$0xf]
  %v60 = vld [vmem:[%s1 + $0x34] sm:$0xf]
  %v61 = vld [vmem:[%s1 + $0x38] sm:$0xf]
  %v62 = vld [vmem:[%s1 + $0x3c] sm:$0xf]
  %v63 = vld [vmem:[%s1 + $0x40] sm:$0xf]
  %v64 = vld [vmem:[%s1 + $0x44] sm:$0xf]
  %v65 = vld [vmem:[%s1 + $0x48] sm:$0xf]
  %v66 = vld [vmem:[%s1 + $0x4c] sm:$0xf]
  %v67 = vld [vmem:[%s1 + $0x50] sm:$0xf]
  %v68 = vld [vmem:[%s1 + $0x54] sm:$0xf]
  %v69 = vld [vmem:[%s1 + $0x58] sm:$0xf]
  %v70 = vld [vmem:[%s1 + $0x5c] sm:$0xf]
  %v71 = vld [vmem:[%s1 + $0x60] sm:$0xf]
  %v72 = vld [vmem:[%s1 + $0x64] sm:$0xf]
  %v73 = vld [vmem:[%s1 + $0x68] sm:$0xf]
  %v74 = vld [vmem:[%s1 + $0x6c] sm:$0xf]
  %v75 = vld [vmem:[%s1 + $0x70] sm:$0xf]
  %v76 = vld [vmem:[%s1 + $0x74] sm:$0xf]
  %v77 = vld [vmem:[%s1 + $0x78] sm:$0xf]
  %v78 = vld [vmem:[%s1 + $0x7c] sm:$0xf]
  %v79 = vld [vmem:[%s2] sm:$0x1]
  %v81 = vlaneseq
  %v82 = vshrl.u32 %v81, 7
  %v83 = vsub.s32 0, %v82
  %v84 = vrot.slane %v79, %v83
  %v118 = vunpack.c.l.b16 %v15
  %v119 = vunpack.c.h.b16 %v15
  %v120 = vunpack.c.l.b16 %v16
  %v121 = vunpack.c.h.b16 %v16
  %v122 = vunpack.c.l.b16 %v17
  %v123 = vunpack.c.h.b16 %v17
  %v124 = vunpack.c.l.b16 %v18
  %v125 = vunpack.c.h.b16 %v18
  %v126 = vunpack.c.l.b16 %v19
  %v127 = vunpack.c.h.b16 %v19
  %v128 = vunpack.c.l.b16 %v20
  %v129 = vunpack.c.h.b16 %v20
  %v130 = vunpack.c.l.b16 %v21
  %v131 = vunpack.c.h.b16 %v21
  %v132 = vunpack.c.l.b16 %v22
  %v133 = vunpack.c.h.b16 %v22
  %v134 = vunpack.c.l.b16 %v23
  %v135 = vunpack.c.h.b16 %v23
  %v136 = vunpack.c.l.b16 %v24
  %v137 = vunpack.c.h.b16 %v24
  %v138 = vunpack.c.l.b16 %v25
  %v139 = vunpack.c.h.b16 %v25
  %v140 = vunpack.c.l.b16 %v26
  %v141 = vunpack.c.h.b16 %v26
  %v142 = vunpack.c.l.b16 %v27
  %v143 = vunpack.c.h.b16 %v27
  %v144 = vunpack.c.l.b16 %v28
  %v145 = vunpack.c.h.b16 %v28
  %v146 = vunpack.c.l.b16 %v29
  %v147 = vunpack.c.h.b16 %v29
  %v148 = vunpack.c.l.b16 %v30
  %v149 = vunpack.c.h.b16 %v30
  %v150 = vunpack.c.l.b16 %v31
  %v151 = vunpack.c.h.b16 %v31
  %v152 = vunpack.c.l.b16 %v32
  %v153 = vunpack.c.h.b16 %v32
  %v154 = vunpack.c.l.b16 %v33
  %v155 = vunpack.c.h.b16 %v33
  %v156 = vunpack.c.l.b16 %v34
  %v157 = vunpack.c.h.b16 %v34
  %v158 = vunpack.c.l.b16 %v35
  %v159 = vunpack.c.h.b16 %v35
  %v160 = vunpack.c.l.b16 %v36
  %v161 = vunpack.c.h.b16 %v36
  %v162 = vunpack.c.l.b16 %v37
  %v163 = vunpack.c.h.b16 %v37
  %v164 = vunpack.c.l.b16 %v38
  %v165 = vunpack.c.h.b16 %v38
  %v166 = vunpack.c.l.b16 %v39
  %v167 = vunpack.c.h.b16 %v39
  %v168 = vunpack.c.l.b16 %v40
  %v169 = vunpack.c.h.b16 %v40
  %v170 = vunpack.c.l.b16 %v41
  %v171 = vunpack.c.h.b16 %v41
  %v172 = vunpack.c.l.b16 %v42
  %v173 = vunpack.c.h.b16 %v42
  %v174 = vunpack.c.l.b16 %v43
  %v175 = vunpack.c.h.b16 %v43
  %v176 = vunpack.c.l.b16 %v44
  %v177 = vunpack.c.h.b16 %v44
  %v178 = vunpack.c.l.b16 %v45
  %v179 = vunpack.c.h.b16 %v45
  %v180 = vunpack.c.l.b16 %v46
  %v181 = vunpack.c.h.b16 %v46
  %v182 = vpack.c.b16 %v120, %v118
  %v183 = vpack.c.b16 %v121, %v119
  %v184 = vpack.c.b16 %v124, %v122
  %v185 = vpack.c.b16 %v125, %v123
  %v186 = vpack.c.b16 %v128, %v126
  %v187 = vpack.c.b16 %v129, %v127
  %v188 = vpack.c.b16 %v132, %v130
  %v189 = vpack.c.b16 %v133, %v131
  %v190 = vpack.c.b16 %v136, %v134
  %v191 = vpack.c.b16 %v137, %v135
  %v192 = vpack.c.b16 %v140, %v138
  %v193 = vpack.c.b16 %v141, %v139
  %v194 = vpack.c.b16 %v144, %v142
  %v195 = vpack.c.b16 %v145, %v143
  %v196 = vpack.c.b16 %v148, %v146
  %v197 = vpack.c.b16 %v149, %v147
  %v198 = vpack.c.b16 %v152, %v150
  %v199 = vpack.c.b16 %v153, %v151
  %v200 = vpack.c.b16 %v156, %v154
  %v201 = vpack.c.b16 %v157, %v155
  %v202 = vpack.c.b16 %v160, %v158
  %v203 = vpack.c.b16 %v161, %v159
  %v204 = vpack.c.b16 %v164, %v162
  %v205 = vpack.c.b16 %v165, %v163
  %v206 = vpack.c.b16 %v168, %v166
  %v207 = vpack.c.b16 %v169, %v167
  %v208 = vpack.c.b16 %v172, %v170
  %v209 = vpack.c.b16 %v173, %v171
  %v210 = vpack.c.b16 %v176, %v174
  %v211 = vpack.c.b16 %v177, %v175
  %v212 = vpack.c.b16 %v180, %v178
  %v213 = vpack.c.b16 %v181, %v179
  %v278 = vunpack.c.l.b16 %v47
  %v279 = vunpack.c.l.b16 %v48
  %v280 = vunpack.c.l.b16 %v49
  %v281 = vunpack.c.l.b16 %v50
  %v282 = vunpack.c.l.b16 %v51
  %v283 = vunpack.c.l.b16 %v52
  %v284 = vunpack.c.l.b16 %v53
  %v285 = vunpack.c.l.b16 %v54
  %v286 = vunpack.c.l.b16 %v55
  %v287 = vunpack.c.l.b16 %v56
  %v288 = vunpack.c.l.b16 %v57
  %v289 = vunpack.c.l.b16 %v58
  %v290 = vunpack.c.l.b16 %v59
  %v291 = vunpack.c.l.b16 %v60
  %v292 = vunpack.c.l.b16 %v61
  %v293 = vunpack.c.l.b16 %v62
  %v294 = vunpack.c.l.b16 %v63
  %v295 = vunpack.c.l.b16 %v64
  %v296 = vunpack.c.l.b16 %v65
  %v297 = vunpack.c.l.b16 %v66
  %v298 = vunpack.c.l.b16 %v67
  %v299 = vunpack.c.l.b16 %v68
  %v300 = vunpack.c.l.b16 %v69
  %v301 = vunpack.c.l.b16 %v70
  %v302 = vunpack.c.l.b16 %v71
  %v303 = vunpack.c.l.b16 %v72
  %v304 = vunpack.c.l.b16 %v73
  %v305 = vunpack.c.l.b16 %v74
  %v306 = vunpack.c.l.b16 %v75
  %v307 = vunpack.c.l.b16 %v76
  %v308 = vunpack.c.l.b16 %v77
  %v309 = vunpack.c.l.b16 %v78
  %v310 = vpack.c.b16 %v279, %v278
  %v311 = vpack.c.b16 %v281, %v280
  %v312 = vpack.c.b16 %v283, %v282
  %v313 = vpack.c.b16 %v285, %v284
  %v314 = vpack.c.b16 %v287, %v286
  %v315 = vpack.c.b16 %v289, %v288
  %v316 = vpack.c.b16 %v291, %v290
  %v317 = vpack.c.b16 %v293, %v292
  %v318 = vpack.c.b16 %v295, %v294
  %v319 = vpack.c.b16 %v297, %v296
  %v320 = vpack.c.b16 %v299, %v298
  %v321 = vpack.c.b16 %v301, %v300
  %v322 = vpack.c.b16 %v303, %v302
  %v323 = vpack.c.b16 %v305, %v304
  %v324 = vpack.c.b16 %v307, %v306
  %v325 = vpack.c.b16 %v309, %v308
  %342 = vmatprep.subr.bf16.mxu0 0
  %343 = vmatpush1.bf16.msra.mxu0 %v310
  %344 = vmatprep.subr.bf16.mxu0 0
  %345 = vmatpush1.bf16.msra.mxu0 %v311
  %346 = vmatprep.subr.bf16.mxu0 0
  %347 = vmatpush1.bf16.msra.mxu0 %v312
  %348 = vmatprep.subr.bf16.mxu0 0
  %349 = vmatpush1.bf16.msra.mxu0 %v313
  %350 = vmatprep.subr.bf16.mxu0 0
  %351 = vmatpush1.bf16.msra.mxu0 %v314
  %352 = vmatprep.subr.bf16.mxu0 0
  %353 = vmatpush1.bf16.msra.mxu0 %v315
  %354 = vmatprep.subr.bf16.mxu0 0
  %355 = vmatpush1.bf16.msra.mxu0 %v316
  %356 = vmatprep.subr.bf16.mxu0 0
  %357 = vmatpush1.bf16.msra.mxu0 %v317
  %358 = vmatprep.subr.bf16.mxu0 0
  %359 = vmatpush1.bf16.msra.mxu0 %v318
  %360 = vmatprep.subr.bf16.mxu0 0
  %361 = vmatpush1.bf16.msra.mxu0 %v319
  %362 = vmatprep.subr.bf16.mxu0 0
  %363 = vmatpush1.bf16.msra.mxu0 %v320
  %364 = vmatprep.subr.bf16.mxu0 0
  %365 = vmatpush1.bf16.msra.mxu0 %v321
  %366 = vmatprep.subr.bf16.mxu0 0
  %367 = vmatpush1.bf16.msra.mxu0 %v322
  %368 = vmatprep.subr.bf16.mxu0 0
  %369 = vmatpush1.bf16.msra.mxu0 %v323
  %370 = vmatprep.subr.bf16.mxu0 0
  %371 = vmatpush1.bf16.msra.mxu0 %v324
  %372 = vmatprep.subr.bf16.mxu0 0
  %373 = vmatpush1.bf16.msra.mxu0 %v325
  %374 = vmatprep.mubr.bf16.mxu0 %v183
  %375 = vmatmul.mubr.bf16.gmra.mrb[0].mxu0 %v182
  %v376 = vpop.f32.mrb[0].mxu0
  %v377 = vadd.f32 %v84, %v376
  %v378 = vpop.f32.mrb[0].mxu0
  %v379 = vpop.f32.mrb[0].mxu0
  %v380 = vadd.f32 %v84, %v379
  %v381 = vpop.f32.mrb[0].mxu0
  %382 = vmatprep.mubr.bf16.mxu0 %v185
  %383 = vmatmul.mubr.bf16.gmra.mrb[0].mxu0 %v184
  %v384 = vpop.f32.mrb[0].mxu0
  %v385 = vadd.f32 %v84, %v384
  %v386 = vpop.f32.mrb[0].mxu0
  %v387 = vpop.f32.mrb[0].mxu0
  %v388 = vadd.f32 %v84, %v387
  %v389 = vpop.f32.mrb[0].mxu0
  %390 = vmatprep.mubr.bf16.mxu0 %v187
  %391 = vmatmul.mubr.bf16.gmra.mrb[0].mxu0 %v186
  %v392 = vpop.f32.mrb[0].mxu0
  %v393 = vadd.f32 %v84, %v392
  %v394 = vpop.f32.mrb[0].mxu0
  %v395 = vpop.f32.mrb[0].mxu0
  %v396 = vadd.f32 %v84, %v395
  %v397 = vpop.f32.mrb[0].mxu0
  %398 = vmatprep.mubr.bf16.mxu0 %v189
  %399 = vmatmul.mubr.bf16.gmra.mrb[0].mxu0 %v188
  %v400 = vpop.f32.mrb[0].mxu0
  %v401 = vadd.f32 %v84, %v400
  %v402 = vpop.f32.mrb[0].mxu0
  %v403 = vpop.f32.mrb[0].mxu0
  %v404 = vadd.f32 %v84, %v403
  %v405 = vpop.f32.mrb[0].mxu0
  %406 = vmatprep.mubr.bf16.mxu0 %v191
  %407 = vmatmul.mubr.bf16.gmra.mrb[0].mxu0 %v190
  %v408 = vpop.f32.mrb[0].mxu0
  %v409 = vadd.f32 %v84, %v408
  %v410 = vpop.f32.mrb[0].mxu0
  %v411 = vpop.f32.mrb[0].mxu0
  %v412 = vadd.f32 %v84, %v411
  %v413 = vpop.f32.mrb[0].mxu0
  %414 = vmatprep.mubr.bf16.mxu0 %v193
  %415 = vmatmul.mubr.bf16.gmra.mrb[0].mxu0 %v192
  %v416 = vpop.f32.mrb[0].mxu0
  %v417 = vadd.f32 %v84, %v416
  %v418 = vpop.f32.mrb[0].mxu0
  %v419 = vpop.f32.mrb[0].mxu0
  %v420 = vadd.f32 %v84, %v419
  %v421 = vpop.f32.mrb[0].mxu0
  %422 = vmatprep.mubr.bf16.mxu0 %v195
  %423 = vmatmul.mubr.bf16.gmra.mrb[0].mxu0 %v194
  %v424 = vpop.f32.mrb[0].mxu0
  %v425 = vadd.f32 %v84, %v424
  %v426 = vpop.f32.mrb[0].mxu0
  %v427 = vpop.f32.mrb[0].mxu0
  %v428 = vadd.f32 %v84, %v427
  %v429 = vpop.f32.mrb[0].mxu0
  %430 = vmatprep.mubr.bf16.mxu0 %v197
  %431 = vmatmul.mubr.bf16.gmra.mrb[0].mxu0 %v196
  %v432 = vpop.f32.mrb[0].mxu0
  %v433 = vadd.f32 %v84, %v432
  %v434 = vpop.f32.mrb[0].mxu0
  %v435 = vpop.f32.mrb[0].mxu0
  %v436 = vadd.f32 %v84, %v435
  %v437 = vpop.f32.mrb[0].mxu0
  %438 = vmatprep.mubr.bf16.mxu0 %v199
  %439 = vmatmul.mubr.bf16.gmra.mrb[0].mxu0 %v198
  %v440 = vpop.f32.mrb[0].mxu0
  %v441 = vadd.f32 %v84, %v440
  %v442 = vpop.f32.mrb[0].mxu0
  %v443 = vpop.f32.mrb[0].mxu0
  %v444 = vadd.f32 %v84, %v443
  %v445 = vpop.f32.mrb[0].mxu0
  %446 = vmatprep.mubr.bf16.mxu0 %v201
  %447 = vmatmul.mubr.bf16.gmra.mrb[0].mxu0 %v200
  %v448 = vpop.f32.mrb[0].mxu0
  %v449 = vadd.f32 %v84, %v448
  %v450 = vpop.f32.mrb[0].mxu0
  %v451 = vpop.f32.mrb[0].mxu0
  %v452 = vadd.f32 %v84, %v451
  %v453 = vpop.f32.mrb[0].mxu0
  %454 = vmatprep.mubr.bf16.mxu0 %v203
  %455 = vmatmul.mubr.bf16.gmra.mrb[0].mxu0 %v202
  %v456 = vpop.f32.mrb[0].mxu0
  %v457 = vadd.f32 %v84, %v456
  %v458 = vpop.f32.mrb[0].mxu0
  %v459 = vpop.f32.mrb[0].mxu0
  %v460 = vadd.f32 %v84, %v459
  %v461 = vpop.f32.mrb[0].mxu0
  %462 = vmatprep.mubr.bf16.mxu0 %v205
  %463 = vmatmul.mubr.bf16.gmra.mrb[0].mxu0 %v204
  %v464 = vpop.f32.mrb[0].mxu0
  %v465 = vadd.f32 %v84, %v464
  %v466 = vpop.f32.mrb[0].mxu0
  %v467 = vpop.f32.mrb[0].mxu0
  %v468 = vadd.f32 %v84, %v467
  %v469 = vpop.f32.mrb[0].mxu0
  %470 = vmatprep.mubr.bf16.mxu0 %v207
  %471 = vmatmul.mubr.bf16.gmra.mrb[0].mxu0 %v206
  %v472 = vpop.f32.mrb[0].mxu0
  %v473 = vadd.f32 %v84, %v472
  %v474 = vpop.f32.mrb[0].mxu0
  %v475 = vpop.f32.mrb[0].mxu0
  %v476 = vadd.f32 %v84, %v475
  %v477 = vpop.f32.mrb[0].mxu0
  %478 = vmatprep.mubr.bf16.mxu0 %v209
  %479 = vmatmul.mubr.bf16.gmra.mrb[0].mxu0 %v208
  %v480 = vpop.f32.mrb[0].mxu0
  %v481 = vadd.f32 %v84, %v480
  %v482 = vpop.f32.mrb[0].mxu0
  %v483 = vpop.f32.mrb[0].mxu0
  %v484 = vadd.f32 %v84, %v483
  %v485 = vpop.f32.mrb[0].mxu0
  %486 = vmatprep.mubr.bf16.mxu0 %v211
  %487 = vmatmul.mubr.bf16.gmra.mrb[0].mxu0 %v210
  %v488 = vpop.f32.mrb[0].mxu0
  %v489 = vadd.f32 %v84, %v488
  %v490 = vpop.f32.mrb[0].mxu0
  %v491 = vpop.f32.mrb[0].mxu0
  %v492 = vadd.f32 %v84, %v491
  %v493 = vpop.f32.mrb[0].mxu0
  %494 = vmatprep.mubr.bf16.mxu0 %v213
  %495 = vmatmul.mubr.bf16.gmra.mrb[0].mxu0 %v212
  %v496 = vpop.f32.mrb[0].mxu0
  %v497 = vadd.f32 %v84, %v496
  %v498 = vpop.f32.mrb[0].mxu0
  %v499 = vpop.f32.mrb[0].mxu0
  %v500 = vadd.f32 %v84, %v499
  %v501 = vpop.f32.mrb[0].mxu0
  %502 = vdwg.mxu0
  %503 = vst [vmem:[%s3] sm:$0xff] %v377
  %504 = vst [vmem:[%s3 + $0x8] sm:$0xff] %v380
  %505 = vst [vmem:[%s3 + $0x10] sm:$0xff] %v385
  %506 = vst [vmem:[%s3 + $0x18] sm:$0xff] %v388
  %507 = vst [vmem:[%s3 + $0x20] sm:$0xff] %v393
  %508 = vst [vmem:[%s3 + $0x28] sm:$0xff] %v396
  %509 = vst [vmem:[%s3 + $0x30] sm:$0xff] %v401
  %510 = vst [vmem:[%s3 + $0x38] sm:$0xff] %v404
  %511 = vst [vmem:[%s3 + $0x40] sm:$0xff] %v409
  %512 = vst [vmem:[%s3 + $0x48] sm:$0xff] %v412
  %513 = vst [vmem:[%s3 + $0x50] sm:$0xff] %v417
  %514 = vst [vmem:[%s3 + $0x58] sm:$0xff] %v420
  %515 = vst [vmem:[%s3 + $0x60] sm:$0xff] %v425
  %516 = vst [vmem:[%s3 + $0x68] sm:$0xff] %v428
  %517 = vst [vmem:[%s3 + $0x70] sm:$0xff] %v433
  %518 = vst [vmem:[%s3 + $0x78] sm:$0xff] %v436
  %519 = vst [vmem:[%s3 + $0x80] sm:$0xff] %v441
  %520 = vst [vmem:[%s3 + $0x88] sm:$0xff] %v444
  %521 = vst [vmem:[%s3 + $0x90] sm:$0xff] %v449
  %522 = vst [vmem:[%s3 + $0x98] sm:$0xff] %v452
  %523 = vst [vmem:[%s3 + $0xa0] sm:$0xff] %v457
  %524 = vst [vmem:[%s3 + $0xa8] sm:$0xff] %v460
  %525 = vst [vmem:[%s3 + $0xb0] sm:$0xff] %v465
  %526 = vst [vmem:[%s3 + $0xb8] sm:$0xff] %v468
  %527 = vst [vmem:[%s3 + $0xc0] sm:$0xff] %v473
  %528 = vst [vmem:[%s3 + $0xc8] sm:$0xff] %v476
  %529 = vst [vmem:[%s3 + $0xd0] sm:$0xff] %v481
  %530 = vst [vmem:[%s3 + $0xd8] sm:$0xff] %v484
  %531 = vst [vmem:[%s3 + $0xe0] sm:$0xff] %v489
  %532 = vst [vmem:[%s3 + $0xe8] sm:$0xff] %v492
  %533 = vst [vmem:[%s3 + $0xf0] sm:$0xff] %v497
  %534 = vst [vmem:[%s3 + $0xf8] sm:$0xff] %v500
  // Predicated region
  $region14: #{gcn_encoder_forward.3} parent=0 // pred_check
    _
  $region15: #{gcn_encoder_forward.3} parent=0 // pred_check_branch
    %536 = sbr.rel (0) target = $region17
  $region16: #{gcn_encoder_forward.3} parent=0 // pred_region
    _
  $region17: #{gcn_encoder_forward.3} parent=0 // pred_fallthru
    _
  // Predicated region
  $region18: #{gcn_encoder_forward.3} parent=0 // pred_check
    _
  $region19: #{gcn_encoder_forward.3} parent=0 // pred_check_branch
    %538 = sbr.rel (0) target = $region21
  $region20: #{gcn_encoder_forward.3} parent=0 // pred_region
    _
  $region21: #{gcn_encoder_forward.3} parent=0 // pred_fallthru
    _

// kernel: gcn_encoder_forward.2
$region0: #{gcn_encoder_forward.2}
  #allocation0 [shape = 'u32[]', space=smem, size = 0x4, offset = 0x4, fixed_abs, tag = 'smem constant byte address 0x4 - core index']
  #allocation1 [shape = 'u32[144,128]{1,0:T(1,128)}', space=vmem, size = 0x12000, scoped, tag = 'internal scratch']
  %s0 = inlined_call_operand.vmem [shape: bf16[256,256], index: 0, kind: input, shape index: {}]
  %s1 = inlined_call_operand.vmem [shape: bf16[256,128], index: 1, kind: input, shape index: {}]
  %s2 = inlined_call_operand.vmem [shape: f32[1,128], index: 2, kind: input, shape index: {}]
  %s3 = inlined_call_operand.vmem [shape: bf16[256,128], index: 3, kind: output, shape index: {}]
  %s4 = sld [smem:[#allocation0]]
  $region22: #{gcn_encoder_forward.2} parent=0
    _
  %s6 = ssub.s32 1, %s4
  %s7 = scalar_select 0, %s6, %s4
  // Predicated region
  $region2: #{gcn_encoder_forward.2} parent=0 // pred_check
    _
  $region3: #{gcn_encoder_forward.2} parent=0 // pred_check_branch
    %9 = sbr.rel (0) target = $region5
  $region4: #{gcn_encoder_forward.2} parent=0 // pred_region
    _
  $region5: #{gcn_encoder_forward.2} parent=0 // pred_fallthru
    _
  // Predicated region
  $region6: #{gcn_encoder_forward.2} parent=0 // pred_check
    _
  $region7: #{gcn_encoder_forward.2} parent=0 // pred_check_branch
    %11 = sbr.rel (0) target = $region9
  $region8: #{gcn_encoder_forward.2} parent=0 // pred_region
    _
  $region9: #{gcn_encoder_forward.2} parent=0 // pred_fallthru
    _
  // Predicated region
  $region10: #{gcn_encoder_forward.2} parent=0 // pred_check
    _
  $region11: #{gcn_encoder_forward.2} parent=0 // pred_check_branch
    %13 = sbr.rel (0) target = $region13
  $region12: #{gcn_encoder_forward.2} parent=0 // pred_region
    _
  $region13: #{gcn_encoder_forward.2} parent=0 // pred_fallthru
    _
  %v15 = vld [vmem:[%s0] sm:$0xff]
  %v16 = vld [vmem:[%s0 + $0x8] sm:$0xff]
  %v17 = vld [vmem:[%s0 + $0x10] sm:$0xff]
  %v18 = vld [vmem:[%s0 + $0x18] sm:$0xff]
  %v19 = vld [vmem:[%s0 + $0x20] sm:$0xff]
  %v20 = vld [vmem:[%s0 + $0x28] sm:$0xff]
  %v21 = vld [vmem:[%s0 + $0x30] sm:$0xff]
  %v22 = vld [vmem:[%s0 + $0x38] sm:$0xff]
  %v23 = vld [vmem:[%s0 + $0x40] sm:$0xff]
  %v24 = vld [vmem:[%s0 + $0x48] sm:$0xff]
  %v25 = vld [vmem:[%s0 + $0x50] sm:$0xff]
  %v26 = vld [vmem:[%s0 + $0x58] sm:$0xff]
  %v27 = vld [vmem:[%s0 + $0x60] sm:$0xff]
  %v28 = vld [vmem:[%s0 + $0x68] sm:$0xff]
  %v29 = vld [vmem:[%s0 + $0x70] sm:$0xff]
  %v30 = vld [vmem:[%s0 + $0x78] sm:$0xff]
  %v31 = vld [vmem:[%s0 + $0x80] sm:$0xff]
  %v32 = vld [vmem:[%s0 + $0x88] sm:$0xff]
  %v33 = vld [vmem:[%s0 + $0x90] sm:$0xff]
  %v34 = vld [vmem:[%s0 + $0x98] sm:$0xff]
  %v35 = vld [vmem:[%s0 + $0xa0] sm:$0xff]
  %v36 = vld [vmem:[%s0 + $0xa8] sm:$0xff]
  %v37 = vld [vmem:[%s0 + $0xb0] sm:$0xff]
  %v38 = vld [vmem:[%s0 + $0xb8] sm:$0xff]
  %v39 = vld [vmem:[%s0 + $0xc0] sm:$0xff]
  %v40 = vld [vmem:[%s0 + $0xc8] sm:$0xff]
  %v41 = vld [vmem:[%s0 + $0xd0] sm:$0xff]
  %v42 = vld [vmem:[%s0 + $0xd8] sm:$0xff]
  %v43 = vld [vmem:[%s0 + $0xe0] sm:$0xff]
  %v44 = vld [vmem:[%s0 + $0xe8] sm:$0xff]
  %v45 = vld [vmem:[%s0 + $0xf0] sm:$0xff]
  %v46 = vld [vmem:[%s0 + $0xf8] sm:$0xff]
  %v47 = vld [vmem:[%s1] sm:$0xf]
  %v48 = vld [vmem:[%s1 + $0x4] sm:$0xf]
  %v49 = vld [vmem:[%s1 + $0x8] sm:$0xf]
  %v50 = vld [vmem:[%s1 + $0xc] sm:$0xf]
  %v51 = vld [vmem:[%s1 + $0x10] sm:$0xf]
  %v52 = vld [vmem:[%s1 + $0x14] sm:$0xf]
  %v53 = vld [vmem:[%s1 + $0x18] sm:$0xf]
  %v54 = vld [vmem:[%s1 + $0x1c] sm:$0xf]
  %v55 = vld [vmem:[%s1 + $0x20] sm:$0xf]
  %v56 = vld [vmem:[%s1 + $0x24] sm:$0xf]
  %v57 = vld [vmem:[%s1 + $0x28] sm:$0xf]
  %v58 = vld [vmem:[%s1 + $0x2c] sm:$0xf]
  %v59 = vld [vmem:[%s1 + $0x30] sm:$0xf]
  %v60 = vld [vmem:[%s1 + $0x34] sm:$0xf]
  %v61 = vld [vmem:[%s1 + $0x38] sm:$0xf]
  %v62 = vld [vmem:[%s1 + $0x3c] sm:$0xf]
  %v63 = vld [vmem:[%s1 + $0x40] sm:$0xf]
  %v64 = vld [vmem:[%s1 + $0x44] sm:$0xf]
  %v65 = vld [vmem:[%s1 + $0x48] sm:$0xf]
  %v66 = vld [vmem:[%s1 + $0x4c] sm:$0xf]
  %v67 = vld [vmem:[%s1 + $0x50] sm:$0xf]
  %v68 = vld [vmem:[%s1 + $0x54] sm:$0xf]
  %v69 = vld [vmem:[%s1 + $0x58] sm:$0xf]
  %v70 = vld [vmem:[%s1 + $0x5c] sm:$0xf]
  %v71 = vld [vmem:[%s1 + $0x60] sm:$0xf]
  %v72 = vld [vmem:[%s1 + $0x64] sm:$0xf]
  %v73 = vld [vmem:[%s1 + $0x68] sm:$0xf]
  %v74 = vld [vmem:[%s1 + $0x6c] sm:$0xf]
  %v75 = vld [vmem:[%s1 + $0x70] sm:$0xf]
  %v76 = vld [vmem:[%s1 + $0x74] sm:$0xf]
  %v77 = vld [vmem:[%s1 + $0x78] sm:$0xf]
  %v78 = vld [vmem:[%s1 + $0x7c] sm:$0xf]
  %v79 = vld [vmem:[%s2] sm:$0x1]
  %v81 = vlaneseq
  %v82 = vshrl.u32 %v81, 7
  %v83 = vsub.s32 0, %v82
  %v84 = vrot.slane %v79, %v83
  %v118 = vunpack.c.l.b16 %v15
  %v119 = vunpack.c.h.b16 %v15
  %v120 = vunpack.c.l.b16 %v16
  %v121 = vunpack.c.h.b16 %v16
  %v122 = vunpack.c.l.b16 %v17
  %v123 = vunpack.c.h.b16 %v17
  %v124 = vunpack.c.l.b16 %v18
  %v125 = vunpack.c.h.b16 %v18
  %v126 = vunpack.c.l.b16 %v19
  %v127 = vunpack.c.h.b16 %v19
  %v128 = vunpack.c.l.b16 %v20
  %v129 = vunpack.c.h.b16 %v20
  %v130 = vunpack.c.l.b16 %v21
  %v131 = vunpack.c.h.b16 %v21
  %v132 = vunpack.c.l.b16 %v22
  %v133 = vunpack.c.h.b16 %v22
  %v134 = vunpack.c.l.b16 %v23
  %v135 = vunpack.c.h.b16 %v23
  %v136 = vunpack.c.l.b16 %v24
  %v137 = vunpack.c.h.b16 %v24
  %v138 = vunpack.c.l.b16 %v25
  %v139 = vunpack.c.h.b16 %v25
  %v140 = vunpack.c.l.b16 %v26
  %v141 = vunpack.c.h.b16 %v26
  %v142 = vunpack.c.l.b16 %v27
  %v143 = vunpack.c.h.b16 %v27
  %v144 = vunpack.c.l.b16 %v28
  %v145 = vunpack.c.h.b16 %v28
  %v146 = vunpack.c.l.b16 %v29
  %v147 = vunpack.c.h.b16 %v29
  %v148 = vunpack.c.l.b16 %v30
  %v149 = vunpack.c.h.b16 %v30
  %v150 = vunpack.c.l.b16 %v31
  %v151 = vunpack.c.h.b16 %v31
  %v152 = vunpack.c.l.b16 %v32
  %v153 = vunpack.c.h.b16 %v32
  %v154 = vunpack.c.l.b16 %v33
  %v155 = vunpack.c.h.b16 %v33
  %v156 = vunpack.c.l.b16 %v34
  %v157 = vunpack.c.h.b16 %v34
  %v158 = vunpack.c.l.b16 %v35
  %v159 = vunpack.c.h.b16 %v35
  %v160 = vunpack.c.l.b16 %v36
  %v161 = vunpack.c.h.b16 %v36
  %v162 = vunpack.c.l.b16 %v37
  %v163 = vunpack.c.h.b16 %v37
  %v164 = vunpack.c.l.b16 %v38
  %v165 = vunpack.c.h.b16 %v38
  %v166 = vunpack.c.l.b16 %v39
  %v167 = vunpack.c.h.b16 %v39
  %v168 = vunpack.c.l.b16 %v40
  %v169 = vunpack.c.h.b16 %v40
  %v170 = vunpack.c.l.b16 %v41
  %v171 = vunpack.c.h.b16 %v41
  %v172 = vunpack.c.l.b16 %v42
  %v173 = vunpack.c.h.b16 %v42
  %v174 = vunpack.c.l.b16 %v43
  %v175 = vunpack.c.h.b16 %v43
  %v176 = vunpack.c.l.b16 %v44
  %v177 = vunpack.c.h.b16 %v44
  %v178 = vunpack.c.l.b16 %v45
  %v179 = vunpack.c.h.b16 %v45
  %v180 = vunpack.c.l.b16 %v46
  %v181 = vunpack.c.h.b16 %v46
  %v182 = vpack.c.b16 %v120, %v118
  %v183 = vpack.c.b16 %v121, %v119
  %v184 = vpack.c.b16 %v124, %v122
  %v185 = vpack.c.b16 %v125, %v123
  %v186 = vpack.c.b16 %v128, %v126
  %v187 = vpack.c.b16 %v129, %v127
  %v188 = vpack.c.b16 %v132, %v130
  %v189 = vpack.c.b16 %v133, %v131
  %v190 = vpack.c.b16 %v136, %v134
  %v191 = vpack.c.b16 %v137, %v135
  %v192 = vpack.c.b16 %v140, %v138
  %v193 = vpack.c.b16 %v141, %v139
  %v194 = vpack.c.b16 %v144, %v142
  %v195 = vpack.c.b16 %v145, %v143
  %v196 = vpack.c.b16 %v148, %v146
  %v197 = vpack.c.b16 %v149, %v147
  %v198 = vpack.c.b16 %v152, %v150
  %v199 = vpack.c.b16 %v153, %v151
  %v200 = vpack.c.b16 %v156, %v154
  %v201 = vpack.c.b16 %v157, %v155
  %v202 = vpack.c.b16 %v160, %v158
  %v203 = vpack.c.b16 %v161, %v159
  %v204 = vpack.c.b16 %v164, %v162
  %v205 = vpack.c.b16 %v165, %v163
  %v206 = vpack.c.b16 %v168, %v166
  %v207 = vpack.c.b16 %v169, %v167
  %v208 = vpack.c.b16 %v172, %v170
  %v209 = vpack.c.b16 %v173, %v171
  %v210 = vpack.c.b16 %v176, %v174
  %v211 = vpack.c.b16 %v177, %v175
  %v212 = vpack.c.b16 %v180, %v178
  %v213 = vpack.c.b16 %v181, %v179
  %v278 = vunpack.c.l.b16 %v47
  %v279 = vunpack.c.l.b16 %v48
  %v280 = vunpack.c.l.b16 %v49
  %v281 = vunpack.c.l.b16 %v50
  %v282 = vunpack.c.l.b16 %v51
  %v283 = vunpack.c.l.b16 %v52
  %v284 = vunpack.c.l.b16 %v53
  %v285 = vunpack.c.l.b16 %v54
  %v286 = vunpack.c.l.b16 %v55
  %v287 = vunpack.c.l.b16 %v56
  %v288 = vunpack.c.l.b16 %v57
  %v289 = vunpack.c.l.b16 %v58
  %v290 = vunpack.c.l.b16 %v59
  %v291 = vunpack.c.l.b16 %v60
  %v292 = vunpack.c.l.b16 %v61
  %v293 = vunpack.c.l.b16 %v62
  %v294 = vunpack.c.l.b16 %v63
  %v295 = vunpack.c.l.b16 %v64
  %v296 = vunpack.c.l.b16 %v65
  %v297 = vunpack.c.l.b16 %v66
  %v298 = vunpack.c.l.b16 %v67
  %v299 = vunpack.c.l.b16 %v68
  %v300 = vunpack.c.l.b16 %v69
  %v301 = vunpack.c.l.b16 %v70
  %v302 = vunpack.c.l.b16 %v71
  %v303 = vunpack.c.l.b16 %v72
  %v304 = vunpack.c.l.b16 %v73
  %v305 = vunpack.c.l.b16 %v74
  %v306 = vunpack.c.l.b16 %v75
  %v307 = vunpack.c.l.b16 %v76
  %v308 = vunpack.c.l.b16 %v77
  %v309 = vunpack.c.l.b16 %v78
  %v310 = vpack.c.b16 %v279, %v278
  %v311 = vpack.c.b16 %v281, %v280
  %v312 = vpack.c.b16 %v283, %v282
  %v313 = vpack.c.b16 %v285, %v284
  %v314 = vpack.c.b16 %v287, %v286
  %v315 = vpack.c.b16 %v289, %v288
  %v316 = vpack.c.b16 %v291, %v290
  %v317 = vpack.c.b16 %v293, %v292
  %v318 = vpack.c.b16 %v295, %v294
  %v319 = vpack.c.b16 %v297, %v296
  %v320 = vpack.c.b16 %v299, %v298
  %v321 = vpack.c.b16 %v301, %v300
  %v322 = vpack.c.b16 %v303, %v302
  %v323 = vpack.c.b16 %v305, %v304
  %v324 = vpack.c.b16 %v307, %v306
  %v325 = vpack.c.b16 %v309, %v308
  %342 = vmatprep.subr.bf16.mxu0 0
  %343 = vmatpush1.bf16.msra.mxu0 %v310
  %344 = vmatprep.subr.bf16.mxu0 0
  %345 = vmatpush1.bf16.msra.mxu0 %v311
  %346 = vmatprep.subr.bf16.mxu0 0
  %347 = vmatpush1.bf16.msra.mxu0 %v312
  %348 = vmatprep.subr.bf16.mxu0 0
  %349 = vmatpush1.bf16.msra.mxu0 %v313
  %350 = vmatprep.subr.bf16.mxu0 0
  %351 = vmatpush1.bf16.msra.mxu0 %v314
  %352 = vmatprep.subr.bf16.mxu0 0
  %353 = vmatpush1.bf16.msra.mxu0 %v315
  %354 = vmatprep.subr.bf16.mxu0 0
  %355 = vmatpush1.bf16.msra.mxu0 %v316
  %356 = vmatprep.subr.bf16.mxu0 0
  %357 = vmatpush1.bf16.msra.mxu0 %v317
  %358 = vmatprep.subr.bf16.mxu0 0
  %359 = vmatpush1.bf16.msra.mxu0 %v318
  %360 = vmatprep.subr.bf16.mxu0 0
  %361 = vmatpush1.bf16.msra.mxu0 %v319
  %362 = vmatprep.subr.bf16.mxu0 0
  %363 = vmatpush1.bf16.msra.mxu0 %v320
  %364 = vmatprep.subr.bf16.mxu0 0
  %365 = vmatpush1.bf16.msra.mxu0 %v321
  %366 = vmatprep.subr.bf16.mxu0 0
  %367 = vmatpush1.bf16.msra.mxu0 %v322
  %368 = vmatprep.subr.bf16.mxu0 0
  %369 = vmatpush1.bf16.msra.mxu0 %v323
  %370 = vmatprep.subr.bf16.mxu0 0
  %371 = vmatpush1.bf16.msra.mxu0 %v324
  %372 = vmatprep.subr.bf16.mxu0 0
  %373 = vmatpush1.bf16.msra.mxu0 %v325
  %374 = vmatprep.mubr.bf16.mxu0 %v183
  %375 = vmatmul.mubr.bf16.gmra.mrb[0].mxu0 %v182
  %v376 = vpop.f32.mrb[0].mxu0
  %v377 = vadd.f32 %v84, %v376
  %v378 = vpop.f32.mrb[0].mxu0
  %v379 = vpop.f32.mrb[0].mxu0
  %v380 = vadd.f32 %v84, %v379
  %v381 = vpop.f32.mrb[0].mxu0
  %382 = vmatprep.mubr.bf16.mxu0 %v185
  %383 = vmatmul.mubr.bf16.gmra.mrb[0].mxu0 %v184
  %v384 = vpop.f32.mrb[0].mxu0
  %v385 = vadd.f32 %v84, %v384
  %v386 = vpop.f32.mrb[0].mxu0
  %v387 = vpop.f32.mrb[0].mxu0
  %v388 = vadd.f32 %v84, %v387
  %v389 = vpop.f32.mrb[0].mxu0
  %390 = vmatprep.mubr.bf16.mxu0 %v187
  %391 = vmatmul.mubr.bf16.gmra.mrb[0].mxu0 %v186
  %v392 = vpop.f32.mrb[0].mxu0
  %v393 = vadd.f32 %v84, %v392
  %v394 = vpop.f32.mrb[0].mxu0
  %v395 = vpop.f32.mrb[0].mxu0
  %v396 = vadd.f32 %v84, %v395
  %v397 = vpop.f32.mrb[0].mxu0
  %398 = vmatprep.mubr.bf16.mxu0 %v189
  %399 = vmatmul.mubr.bf16.gmra.mrb[0].mxu0 %v188
  %v400 = vpop.f32.mrb[0].mxu0
  %v401 = vadd.f32 %v84, %v400
  %v402 = vpop.f32.mrb[0].mxu0
  %v403 = vpop.f32.mrb[0].mxu0
  %v404 = vadd.f32 %v84, %v403
  %v405 = vpop.f32.mrb[0].mxu0
  %406 = vmatprep.mubr.bf16.mxu0 %v191
  %407 = vmatmul.mubr.bf16.gmra.mrb[0].mxu0 %v190
  %v408 = vpop.f32.mrb[0].mxu0
  %v409 = vadd.f32 %v84, %v408
  %v410 = vpop.f32.mrb[0].mxu0
  %v411 = vpop.f32.mrb[0].mxu0
  %v412 = vadd.f32 %v84, %v411
  %v413 = vpop.f32.mrb[0].mxu0
  %414 = vmatprep.mubr.bf16.mxu0 %v193
  %415 = vmatmul.mubr.bf16.gmra.mrb[0].mxu0 %v192
  %v416 = vpop.f32.mrb[0].mxu0
  %v417 = vadd.f32 %v84, %v416
  %v418 = vpop.f32.mrb[0].mxu0
  %v419 = vpop.f32.mrb[0].mxu0
  %v420 = vadd.f32 %v84, %v419
  %v421 = vpop.f32.mrb[0].mxu0
  %422 = vmatprep.mubr.bf16.mxu0 %v195
  %423 = vmatmul.mubr.bf16.gmra.mrb[0].mxu0 %v194
  %v424 = vpop.f32.mrb[0].mxu0
  %v425 = vadd.f32 %v84, %v424
  %v426 = vpop.f32.mrb[0].mxu0
  %v427 = vpop.f32.mrb[0].mxu0
  %v428 = vadd.f32 %v84, %v427
  %v429 = vpop.f32.mrb[0].mxu0
  %430 = vmatprep.mubr.bf16.mxu0 %v197
  %431 = vmatmul.mubr.bf16.gmra.mrb[0].mxu0 %v196
  %v432 = vpop.f32.mrb[0].mxu0
  %v433 = vadd.f32 %v84, %v432
  %v434 = vpop.f32.mrb[0].mxu0
  %v435 = vpop.f32.mrb[0].mxu0
  %v436 = vadd.f32 %v84, %v435
  %v437 = vpop.f32.mrb[0].mxu0
  %438 = vmatprep.mubr.bf16.mxu0 %v199
  %439 = vmatmul.mubr.bf16.gmra.mrb[0].mxu0 %v198
  %v440 = vpop.f32.mrb[0].mxu0
  %v441 = vadd.f32 %v84, %v440
  %v442 = vpop.f32.mrb[0].mxu0
  %v443 = vpop.f32.mrb[0].mxu0
  %v444 = vadd.f32 %v84, %v443
  %v445 = vpop.f32.mrb[0].mxu0
  %446 = vmatprep.mubr.bf16.mxu0 %v201
  %447 = vmatmul.mubr.bf16.gmra.mrb[0].mxu0 %v200
  %v448 = vpop.f32.mrb[0].mxu0
  %v449 = vadd.f32 %v84, %v448
  %v450 = vpop.f32.mrb[0].mxu0
  %v451 = vpop.f32.mrb[0].mxu0
  %v452 = vadd.f32 %v84, %v451
  %v453 = vpop.f32.mrb[0].mxu0
  %454 = vmatprep.mubr.bf16.mxu0 %v203
  %455 = vmatmul.mubr.bf16.gmra.mrb[0].mxu0 %v202
  %v456 = vpop.f32.mrb[0].mxu0
  %v457 = vadd.f32 %v84, %v456
  %v458 = vpop.f32.mrb[0].mxu0
  %v459 = vpop.f32.mrb[0].mxu0
  %v460 = vadd.f32 %v84, %v459
  %v461 = vpop.f32.mrb[0].mxu0
  %462 = vmatprep.mubr.bf16.mxu0 %v205
  %463 = vmatmul.mubr.bf16.gmra.mrb[0].mxu0 %v204
  %v464 = vpop.f32.mrb[0].mxu0
  %v465 = vadd.f32 %v84, %v464
  %v466 = vpop.f32.mrb[0].mxu0
  %v467 = vpop.f32.mrb[0].mxu0
  %v468 = vadd.f32 %v84, %v467
  %v469 = vpop.f32.mrb[0].mxu0
  %470 = vmatprep.mubr.bf16.mxu0 %v207
  %471 = vmatmul.mubr.bf16.gmra.mrb[0].mxu0 %v206
  %v472 = vpop.f32.mrb[0].mxu0
  %v473 = vadd.f32 %v84, %v472
  %v474 = vpop.f32.mrb[0].mxu0
  %v475 = vpop.f32.mrb[0].mxu0
  %v476 = vadd.f32 %v84, %v475
  %v477 = vpop.f32.mrb[0].mxu0
  %478 = vmatprep.mubr.bf16.mxu0 %v209
  %479 = vmatmul.mubr.bf16.gmra.mrb[0].mxu0 %v208
  %v480 = vpop.f32.mrb[0].mxu0
  %v481 = vadd.f32 %v84, %v480
  %v482 = vpop.f32.mrb[0].mxu0
  %v483 = vpop.f32.mrb[0].mxu0
  %v484 = vadd.f32 %v84, %v483
  %v485 = vpop.f32.mrb[0].mxu0
  %486 = vmatprep.mubr.bf16.mxu0 %v211
  %487 = vmatmul.mubr.bf16.gmra.mrb[0].mxu0 %v210
  %v488 = vpop.f32.mrb[0].mxu0
  %v489 = vadd.f32 %v84, %v488
  %v490 = vpop.f32.mrb[0].mxu0
  %v491 = vpop.f32.mrb[0].mxu0
  %v492 = vadd.f32 %v84, %v491
  %v493 = vpop.f32.mrb[0].mxu0
  %494 = vmatprep.mubr.bf16.mxu0 %v213
  %495 = vmatmul.mubr.bf16.gmra.mrb[0].mxu0 %v212
  %v496 = vpop.f32.mrb[0].mxu0
  %v497 = vadd.f32 %v84, %v496
  %v498 = vpop.f32.mrb[0].mxu0
  %v499 = vpop.f32.mrb[0].mxu0
  %v500 = vadd.f32 %v84, %v499
  %v501 = vpop.f32.mrb[0].mxu0
  %502 = vdwg.mxu0
  %v503 = vpack.c.bf16 %v380, %v377
  %v504 = vpack.c.bf16 %v388, %v385
  %v505 = vpack.c.bf16 %v396, %v393
  %v506 = vpack.c.bf16 %v404, %v401
  %v507 = vpack.c.bf16 %v412, %v409
  %v508 = vpack.c.bf16 %v420, %v417
  %v509 = vpack.c.bf16 %v428, %v425
  %v510 = vpack.c.bf16 %v436, %v433
  %v511 = vpack.c.bf16 %v444, %v441
  %v512 = vpack.c.bf16 %v452, %v449
  %v513 = vpack.c.bf16 %v460, %v457
  %v514 = vpack.c.bf16 %v468, %v465
  %v515 = vpack.c.bf16 %v476, %v473
  %v516 = vpack.c.bf16 %v484, %v481
  %v517 = vpack.c.bf16 %v492, %v489
  %v518 = vpack.c.bf16 %v500, %v497
  %519 = vst [vmem:[%s3] sm:$0xff] %v503
  %520 = vst [vmem:[%s3 + $0x8] sm:$0xff] %v504
  %521 = vst [vmem:[%s3 + $0x10] sm:$0xff] %v505
  %522 = vst [vmem:[%s3 + $0x18] sm:$0xff] %v506
  %523 = vst [vmem:[%s3 + $0x20] sm:$0xff] %v507
  %524 = vst [vmem:[%s3 + $0x28] sm:$0xff] %v508
  %525 = vst [vmem:[%s3 + $0x30] sm:$0xff] %v509
  %526 = vst [vmem:[%s3 + $0x38] sm:$0xff] %v510
  %527 = vst [vmem:[%s3 + $0x40] sm:$0xff] %v511
  %528 = vst [vmem:[%s3 + $0x48] sm:$0xff] %v512
  %529 = vst [vmem:[%s3 + $0x50] sm:$0xff] %v513
  %530 = vst [vmem:[%s3 + $0x58] sm:$0xff] %v514
  %531 = vst [vmem:[%s3 + $0x60] sm:$0xff] %v515
  %532 = vst [vmem:[%s3 + $0x68] sm:$0xff] %v516
  %533 = vst [vmem:[%s3 + $0x70] sm:$0xff] %v517
  %534 = vst [vmem:[%s3 + $0x78] sm:$0xff] %v518
  // Predicated region
  $region14: #{gcn_encoder_forward.2} parent=0 // pred_check
    _
  $region15: #{gcn_encoder_forward.2} parent=0 // pred_check_branch
    %536 = sbr.rel (0) target = $region17
  $region16: #{gcn_encoder_forward.2} parent=0 // pred_region
    _
  $region17: #{gcn_encoder_forward.2} parent=0 // pred_fallthru
    _
  // Predicated region
  $region18: #{gcn_encoder_forward.2} parent=0 // pred_check
    _
  $region19: #{gcn_encoder_forward.2} parent=0 // pred_check_branch
    %538 = sbr.rel (0) target = $region21
  $region20: #{gcn_encoder_forward.2} parent=0 // pred_region
    _
  $region21: #{gcn_encoder_forward.2} parent=0 // pred_fallthru
    _

</llo_original>
